<compile_context>
chip_gen: v7x
topology: tpu7x:2x2x1
jax: 0.10.0
libtpu: 0.0.40
codegen_flags: <defaults>
</compile_context>

<pallas_src>
import functools
import math

import jax
import jax.numpy as jnp
from jax.experimental import pallas as pl
from jax.experimental.pallas import tpu as pltpu

_VMEM_LIMIT = 32 * 1024 * 1024  # fits every generation (v7x physical = 64 MiB)


def _round_up(x, m):
    return (x + m - 1) // m * m


# ----------------------------------------------------------------------------
# Tiled y = x @ w.T  (torch nn.Linear layout, bias=False), optional activation.
# ----------------------------------------------------------------------------
def _matmul_nt_kernel(x_ref, w_ref, o_ref, acc_ref, *, activation):
    @pl.when(pl.program_id(2) == 0)
    def _():
        acc_ref[...] = jnp.zeros_like(acc_ref)

    # x: (tm, tk), w: (tn, tk) -> contract the shared K (last) dim, no transpose.
    acc_ref[...] += jax.lax.dot_general(
        x_ref[...], w_ref[...], (((1,), (1,)), ((), ())),
        preferred_element_type=jnp.float32)

    @pl.when(pl.program_id(2) == pl.num_programs(2) - 1)
    def _():
        r = acc_ref[...]
        if activation == "tanh":
            r = jnp.tanh(r)
        o_ref[...] = r.astype(o_ref.dtype)


def matmul_nt(x, w, *, activation=None, out_dtype=jnp.bfloat16):
    """y = x @ w.T with w in torch Linear layout (out_features, in_features)."""
    M, K = x.shape
    O, K2 = w.shape
    assert K == K2
    tm = min(256, _round_up(M, 8))
    tn = min(256, _round_up(O, 128))
    tk = min(512, _round_up(K, 128))
    Mp, Op, Kp = _round_up(M, tm), _round_up(O, tn), _round_up(K, tk)
    xp = jnp.pad(x.astype(jnp.bfloat16), ((0, Mp - M), (0, Kp - K)))
    wp = jnp.pad(w.astype(jnp.bfloat16), ((0, Op - O), (0, Kp - K)))
    out = pl.pallas_call(
        functools.partial(_matmul_nt_kernel, activation=activation),
        out_shape=jax.ShapeDtypeStruct((Mp, Op), out_dtype),
        grid_spec=pltpu.PrefetchScalarGridSpec(
            num_scalar_prefetch=0,
            grid=(Mp // tm, Op // tn, Kp // tk),
            in_specs=[pl.BlockSpec((tm, tk), lambda i, j, k: (i, k)),
                      pl.BlockSpec((tn, tk), lambda i, j, k: (j, k))],
            out_specs=pl.BlockSpec((tm, tn), lambda i, j, k: (i, j)),
            scratch_shapes=[pltpu.VMEM((tm, tn), jnp.float32)]),
        compiler_params=pltpu.CompilerParams(
            dimension_semantics=("parallel", "parallel", "arbitrary"),
            vmem_limit_bytes=_VMEM_LIMIT),
    )(xp, wp)
    return out[:M, :O]


# ----------------------------------------------------------------------------
# Fused per-step scoring kernel (gridded over batch, weights resident).
#   scores = tanh_clip(log_softmax(cand . ((pivot@W^T * lmh) @ W) / sqrt(H)))
#   carry  = lmh @ w_ln[:, :H].T   (prev-hidden half of next step's ln_transform)
# ----------------------------------------------------------------------------
def _score_kernel(cand_ref, pivot_ref, lmh_ref, w_ent_ref, w_lna_ref,
                  scores_ref, carry_ref, *, n_valid, clip_val, inv_sqrt_h):
    cand = cand_ref[0]                      # (N_pad, E) bf16
    pivot = pivot_ref[0]                    # (1, E)     bf16
    lmh = lmh_ref[0].astype(jnp.float32)    # (1, H)     f32
    w_ent = w_ent_ref[...]                  # (H, E)     bf16
    w_lna = w_lna_ref[...]                  # (H, H)     bf16

    # pivot_h = kg_ent_head(pivot) = pivot @ w_ent.T  (contract E on both)
    pivot_h = jax.lax.dot_general(
        pivot, w_ent, (((1,), (1,)), ((), ())),
        preferred_element_type=jnp.float32)                    # (1, H)
    obj = pivot_h * lmh                                        # (1, H) f32

    # v = (obj @ w_ent) / sqrt(H): W folded onto the pivot side, so the
    # (N_pad, H) candidate projection is never built.
    v = jax.lax.dot_general(
        obj.astype(jnp.bfloat16), w_ent, (((1,), (0,)), ((), ())),
        preferred_element_type=jnp.float32) * inv_sqrt_h       # (1, E)

    # scores = cand . v as a lane-dense (1, N_pad) row (no transpose needed).
    s = jax.lax.dot_general(
        v.astype(jnp.bfloat16), cand, (((1,), (1,)), ((), ())),
        preferred_element_type=jnp.float32)                    # (1, N_pad)

    lane = jax.lax.broadcasted_iota(jnp.int32, s.shape, 1)
    s = jnp.where(lane < n_valid, s, jnp.float32(-1e30))       # mask pad lanes

    # log_softmax + tanh_clip, all in f32.
    m = jnp.max(s, axis=-1, keepdims=True)
    z = s - m
    logp = z - jnp.log(jnp.sum(jnp.exp(z), axis=-1, keepdims=True))
    if clip_val is not None:
        logp = clip_val * jnp.tanh(logp * (1.0 / clip_val))
    scores_ref[...] = logp.reshape(scores_ref.shape)

    carry = jax.lax.dot_general(
        lmh.astype(jnp.bfloat16), w_lna, (((1,), (1,)), ((), ())),
        preferred_element_type=jnp.float32)                    # (1, H)
    carry_ref[...] = carry.reshape(carry_ref.shape)


def score_candidates(cand_emb, pivot_emb, lm_hidden, w_ent, w_lna, *,
                     n_valid, clip_val):
    B, N_pad, E = cand_emb.shape
    H = w_ent.shape[0]
    kernel = functools.partial(
        _score_kernel, n_valid=int(n_valid),
        clip_val=(float(clip_val) if clip_val is not None else None),
        inv_sqrt_h=float(1.0 / math.sqrt(H)))
    scores, carry = pl.pallas_call(
        kernel,
        out_shape=(jax.ShapeDtypeStruct((B, 1, N_pad), jnp.float32),
                   jax.ShapeDtypeStruct((B, 1, H), jnp.float32)),
        grid_spec=pltpu.PrefetchScalarGridSpec(
            num_scalar_prefetch=0,
            grid=(B,),
            in_specs=[
                pl.BlockSpec((1, N_pad, E), lambda b: (b, 0, 0)),
                pl.BlockSpec((1, 1, E), lambda b: (b, 0, 0)),
                pl.BlockSpec((1, 1, H), lambda b: (b, 0, 0)),
                pl.BlockSpec((H, E), lambda b: (0, 0)),   # weights resident
                pl.BlockSpec((H, H), lambda b: (0, 0)),
            ],
            out_specs=(pl.BlockSpec((1, 1, N_pad), lambda b: (b, 0, 0)),
                       pl.BlockSpec((1, 1, H), lambda b: (b, 0, 0)))),
        compiler_params=pltpu.CompilerParams(
            dimension_semantics=("parallel",),
            vmem_limit_bytes=_VMEM_LIMIT),
    )(cand_emb.astype(jnp.bfloat16),
      pivot_emb.reshape(B, 1, E).astype(jnp.bfloat16),
      lm_hidden.reshape(B, 1, H).astype(jnp.float32),
      w_ent, w_lna)
    return scores[:, 0, :], carry[:, 0, :]


# ----------------------------------------------------------------------------
# MaskRefineModel (mlm_model=None branch), parameters initialized in-script
# ----------------------------------------------------------------------------
class MaskRefineModelPallas:
    def __init__(self, num_nodes, num_rels, n_embd, vocab, topK=4,
                 clip_val=10.0, stabilize=True, regularizer_coef=0.04, seed=0):
        H = n_embd
        key = jax.random.PRNGKey(seed)
        ks = jax.random.split(key, 8)
        init = lambda k, shape: (
            0.02 * jax.random.normal(k, shape, jnp.float32)).astype(jnp.bfloat16)
        self.ete = init(ks[0], (num_nodes, H))     # nn.Embedding(num_nodes, n_embd)
        self.w_ent = init(ks[1], (H, H))           # kg_ent_head.weight (n_embd, E)
        self.rte = init(ks[2], (num_rels, H))      # unused in forward (parity)
        self.w_rel = init(ks[3], (H, H))           # kg_rel_head (parity)
        self.lm_ete = init(ks[4], (num_nodes, H))  # mlm_model is None branch
        self.w_ln = init(ks[5], (H, 2 * H))        # ln_transform.weight (H, 2H)
        # TODO(synk): external pretrained GPT-2 lm_model is not reproducible
        # in-script; stand-in LM = wte embedding + token-wise tanh(linear).
        self.wte = init(ks[6], (vocab, H))
        self.w_lm = init(ks[7], (H, H))

        self.n_embd = H
        self.topK = topK
        self.clip_val = clip_val
        self.stabilize = stabilize
        self.regularizer_coef = regularizer_coef

        # One-time projected tables (replaces the per-(j,k) micro linears):
        #   kg_proj  = kg_ent_head(lm_ete)      -> used for all k<j (and j==0)
        #   lnb_proj = lm_ete @ w_ln[:, H:].T   -> lm_ete half of ln_transform
        self.kg_proj_lm_ete = matmul_nt(self.lm_ete, self.w_ent)
        self.lnb_proj_lm_ete = matmul_nt(self.lm_ete, self.w_ln[:, H:])
        self.w_ln_a = self.w_ln[:, :H]             # prev-hidden half (H, H)

    def _lm_forward(self, inputs_embeds):
        # TODO(synk): stand-in for lm_model(inputs_embeds=...).hidden_states[-1]
        B, S, H = inputs_embeds.shape
        h = matmul_nt(inputs_embeds.reshape(B * S, H), self.w_lm,
                      activation="tanh", out_dtype=jnp.float32)
        return h.reshape(B, S, H)

    def forward(self, mlm_inputs, lm_input_ids, lm_attention_masks,
                candidate_ids, candidate_rels, pivot_ids):
        B, M = mlm_inputs.shape
        N = candidate_ids.shape[-1]
        N_pad = _round_up(N, 128)
        batch_range = jnp.arange(B)

        # entity positions (sum(mask)-1) for every (b, j), computed once.
        # NOTE: an all-zero mask row yields -1 (wraps to the last position),
        # matching the reference's silent behavior.
        entity_idx = jnp.sum((lm_attention_masks == 1).astype(jnp.int32),
                             axis=-1) - 1                          # (B, M)

        # pad the candidate axis to a lane-dense multiple of 128; padded slots
        # point at node 0 and are masked to -1e30 inside the score kernel.
        cand_ids_pad = jnp.pad(candidate_ids, ((0, 0), (0, 0), (0, N_pad - N)))

        kg_reps = self.kg_proj_lm_ete[mlm_inputs]                  # (B, M, H)
        lnb_reps = self.lnb_proj_lm_ete[mlm_inputs]                # (B, M, H)

        # token embeddings carried across steps j (equivalent to the reference's
        # rebuild + k=0..j loop: only positions j-1, j change between steps).
        embeds = self.wte[lm_input_ids]                            # (B, S, H)

        carry = None          # lm_hidden @ w_ln[:, :H].T from the previous step
        all_logits = []
        selected_cands, topK_cands, topK_rels = [], [], []

        for j in range(M):
            if j == 0:
                entity_reps = kg_reps[:, 0]                        # kg_ent_head path
            else:
                # ln_transform(cat([prev_hidden, lm_ete_j])) split into halves
                entity_reps = carry + lnb_reps[:, j].astype(jnp.float32)
                # position j-1 reverts to its kg_ent_head projection (the
                # reference overwrites it via the k<j branch on step j).
                embeds = embeds.at[batch_range, entity_idx[:, j - 1]].set(
                    kg_reps[:, j - 1])
            embeds = embeds.at[batch_range, entity_idx[:, j]].set(
                entity_reps.astype(jnp.bfloat16))

            hidden = self._lm_forward(embeds)                      # (B, S, H) f32
            lm_hidden = hidden[batch_range, entity_idx[:, j]]      # (B, H) f32

            cand_emb = self.ete[cand_ids_pad[:, j]]                # (B, N_pad, E)
            pivot_emb = self.ete[pivot_ids[:, j]]                  # (B, E)

            scores_pad, carry = score_candidates(
                cand_emb, pivot_emb, lm_hidden, self.w_ent, self.w_ln_a,
                n_valid=N,
                clip_val=self.clip_val if self.stabilize else None)
            scores = scores_pad[:, :N]                             # (B, N) f32

            cur_cand = candidate_ids[:, j].reshape(B, -1)
            cur_rels = candidate_rels[:, j].reshape(B, -1)

            max_idx = jnp.argmax(scores, axis=1)
            selected_cands.append(cur_cand[batch_range, max_idx][None, :])

            K = min(self.topK, scores.shape[1])
            _, topk_idx = jax.lax.top_k(scores, K)
            topK_cands.append(jnp.take_along_axis(cur_cand, topk_idx, axis=-1)[None])
            topK_rels.append(jnp.take_along_axis(cur_rels, topk_idx, axis=-1)[None])

            all_logits.append(scores)

        return {
            "logits": all_logits,                                    # list of (B, N)
            "selected_cands": jnp.vstack(selected_cands).T,          # (B, M)
            "topK_cands": jnp.vstack(topK_cands).transpose(1, 0, 2),   # (B, M, K)
            "topK_rels": jnp.vstack(topK_rels).transpose(1, 0, 2),     # (B, M, K)
        }


# ----------------------------------------------------------------------------
# Demo
# ----------------------------------------------------------------------------
if __name__ == "__main__":
    B, S, H, M, N = 2, 8, 32, 2, 24
    num_nodes, num_rels, vocab = 64, 16, 50

    key = jax.random.PRNGKey(0)
    ks = jax.random.split(key, 6)
    lm_input_ids = jax.random.randint(ks[0], (B, S), 0, vocab)
    mlm_inputs = jax.random.randint(ks[1], (B, M), 0, num_nodes)
    lens = jnp.array([[4, 6], [5, 7]], dtype=jnp.int32)   # per-(B, M) mask lengths
    lm_attention_masks = (jnp.arange(S)[None, None, :] < lens[:, :, None]).astype(jnp.int32)
    candidate_ids = jax.random.randint(ks[2], (B, M, N), 0, num_nodes)
    candidate_rels = jax.random.randint(ks[3], (B, M, N), 0, num_rels)
    pivot_ids = jax.random.randint(ks[4], (B, M), 0, num_nodes)

    model = MaskRefineModelPallas(
        num_nodes=num_nodes, num_rels=num_rels, n_embd=H, vocab=vocab, topK=4)
    out = model.forward(
        mlm_inputs, lm_input_ids, lm_attention_masks,
        candidate_ids, candidate_rels, pivot_ids)
    jax.block_until_ready(out["logits"])
    jax.block_until_ready(out["selected_cands"])
    jax.block_until_ready(out["topK_cands"])
    jax.block_until_ready(out["topK_rels"])
    print("KERNEL_OK")
</pallas_src>

<mosaic_0001>
module attributes {stable_mosaic.version = 11 : i64} {
  func.func @_matmul_nt_kernel(%arg0: i32, %arg1: i32, %arg2: i32, %arg3: memref<64x128xbf16, #tpu.memory_space<vmem>>, %arg4: memref<128x128xbf16, #tpu.memory_space<vmem>>, %arg5: memref<64x128xbf16, #tpu.memory_space<vmem>>, %arg6: memref<64x128xf32, #tpu.memory_space<vmem>>) attributes {dimension_semantics = [#tpu.dimension_semantics<parallel>, #tpu.dimension_semantics<parallel>, #tpu.dimension_semantics<arbitrary>], iteration_bounds = array<i64: 1, 1, 1>, scalar_prefetch = 0 : i64, scratch_operands = 1 : i64, tpu.core_type = #tpu.core_type<tc>, window_params = [{transform_indices = @transform_0, window_bounds = array<i64: 64, 128>}, {transform_indices = @transform_1, window_bounds = array<i64: 128, 128>}, {transform_indices = @transform_2, window_bounds = array<i64: 64, 128>}]} {
    %c0_i32 = arith.constant 0 : i32
    %0 = arith.cmpi eq, %arg2, %c0_i32 : i32
    %1 = arith.extui %0 : i1 to i32
    %c0_i32_0 = arith.constant 0 : i32
    %2 = arith.cmpi ne, %1, %c0_i32_0 : i32
    scf.if %2 {
      %cst_10 = arith.constant 0.000000e+00 : f32
      %12 = vector.broadcast %cst_10 : f32 to vector<64x128xf32>
      %c0_11 = arith.constant 0 : index
      %c0_12 = arith.constant 0 : index
      %13 = vector.load %arg6[%c0_11, %c0_12] : memref<64x128xf32, #tpu.memory_space<vmem>>, vector<64x128xf32>
      tpu.vector_store %arg6[%c0_11, %c0_12], %12 {strides = array<i32>} : memref<64x128xf32, #tpu.memory_space<vmem>>, vector<64x128xf32>,
    } else {
    }
    %c0 = arith.constant 0 : index
    %c0_1 = arith.constant 0 : index
    %3 = vector.load %arg6[%c0, %c0_1] : memref<64x128xf32, #tpu.memory_space<vmem>>, vector<64x128xf32>
    %c0_2 = arith.constant 0 : index
    %c0_3 = arith.constant 0 : index
    %4 = vector.load %arg3[%c0_2, %c0_3] : memref<64x128xbf16, #tpu.memory_space<vmem>>, vector<64x128xbf16>
    %c0_4 = arith.constant 0 : index
    %c0_5 = arith.constant 0 : index
    %5 = vector.load %arg4[%c0_4, %c0_5] : memref<128x128xbf16, #tpu.memory_space<vmem>>, vector<128x128xbf16>
    %cst = arith.constant dense<0.000000e+00> : vector<64x128xf32>
    %6 = tpu.matmul %4, %5, %cst {dimension_numbers = #tpu.dot_dimension_numbers<[1], [1], [0], [0], [0, 0, 1, 0], [], []>} : vector<64x128xbf16>, vector<128x128xbf16>, vector<64x128xf32> -> vector<64x128xf32>
    %7 = arith.addf %3, %6 : vector<64x128xf32>
    %c0_6 = arith.constant 0 : index
    %c0_7 = arith.constant 0 : index
    %8 = vector.load %arg6[%c0_6, %c0_7] : memref<64x128xf32, #tpu.memory_space<vmem>>, vector<64x128xf32>
    tpu.vector_store %arg6[%c0_6, %c0_7], %7 {strides = array<i32>} : memref<64x128xf32, #tpu.memory_space<vmem>>, vector<64x128xf32>,
    %c0_i32_8 = arith.constant 0 : i32
    %9 = arith.cmpi eq, %arg2, %c0_i32_8 : i32
    %10 = arith.extui %9 : i1 to i32
    %c0_i32_9 = arith.constant 0 : i32
    %11 = arith.cmpi ne, %10, %c0_i32_9 : i32
    scf.if %11 {
      %c0_10 = arith.constant 0 : index
      %c0_11 = arith.constant 0 : index
      %12 = vector.load %arg6[%c0_10, %c0_11] : memref<64x128xf32, #tpu.memory_space<vmem>>, vector<64x128xf32>
      %13 = arith.truncf %12 : vector<64x128xf32> to vector<64x128xbf16>
      %c0_12 = arith.constant 0 : index
      %c0_13 = arith.constant 0 : index
      %14 = vector.load %arg5[%c0_12, %c0_13] : memref<64x128xbf16, #tpu.memory_space<vmem>>, vector<64x128xbf16>
      tpu.vector_store %arg5[%c0_12, %c0_13], %13 {strides = array<i32>} : memref<64x128xbf16, #tpu.memory_space<vmem>>, vector<64x128xbf16>,
    } else {
    }
    return
  }
  func.func @transform_0(%arg0: i32, %arg1: i32, %arg2: i32) -> (i32, i32) {
    %c0_i32 = arith.constant 0 : i32
    return %arg0, %arg2 : i32, i32
  }
  func.func @transform_1(%arg0: i32, %arg1: i32, %arg2: i32) -> (i32, i32) {
    %c0_i32 = arith.constant 0 : i32
    return %arg1, %arg2 : i32, i32
  }
  func.func @transform_2(%arg0: i32, %arg1: i32, %arg2: i32) -> (i32, i32) {
    %c0_i32 = arith.constant 0 : i32
    return %arg0, %arg1 : i32, i32
  }
}

</mosaic_0001>

<llo_original>
// kernel: tpu_custom_call.1
$region0: #{tpu_custom_call.1}
  #allocation0 [shape = 'u32[]', space=smem, size = 0x4, offset = 0x4, fixed_abs, tag = 'smem constant byte address 0x4 - core index']
  #allocation1 [shape = 'u32[144,128]{1,0:T(1,128)}', space=vmem, size = 0x12000, scoped, tag = 'internal scratch']
  #allocation2 [shape = 'f32[64,128]{1,0:T(8,128)}', space=vmem, size = 0x8000, scoped, tag = 'scratch operand']
  %s0 = inlined_call_operand.hbm [shape: bf16[64,128], index: 0, kind: input, shape index: {}]
  %s1 = inlined_call_operand.hbm [shape: bf16[128,128], index: 1, kind: input, shape index: {}]
  %s2 = inlined_call_operand.hbm [shape: bf16[64,128], index: 2, kind: output, shape index: {}]
  %s3 = sld [smem:[#allocation0]]
  $region34: #{tpu_custom_call.1} parent=0
    _
  %s5 = ssub.s32 1, %s3
  %s6 = scalar_select 0, %s5, %s3
  $region1: #{tpu_custom_call.1} parent=0
    #allocation3 [shape = 'u8[16384]{0}', space=vmem, size = 0x4000, scoped, tag = 'input window, operand 0, single buffered']
    #allocation4 [shape = 's32[1]{0}', space=sflag, size = 0x4, scoped, tag = 'scoped memory for tpu_custom_call.1']
    #allocation5 [shape = 's32[1]{0}', space=sflag, size = 0x4, scoped, tag = 'scoped memory for tpu_custom_call.1']
    #allocation6 [shape = 'u8[32768]{0}', space=vmem, size = 0x8000, scoped, tag = 'input window, operand 1, single buffered']
    #allocation7 [shape = 's32[1]{0}', space=sflag, size = 0x4, scoped, tag = 'scoped memory for tpu_custom_call.1']
    #allocation8 [shape = 'u8[16384]{0}', space=vmem, size = 0x4000, scoped, tag = 'output window, operand 0, single buffered']
    %7 = vsyncpa [#allocation4], 0
    %8 = vsyncpa [#allocation7], 0
    %9 = vsyncpa [#allocation5], 0
    // Predicated region
    $region2: #{tpu_custom_call.1} parent=1 // pred_check
      _
    $region3: #{tpu_custom_call.1} parent=1 // pred_check_branch
      %11 = sbr.rel (0) target = $region5
    $region4: #{tpu_custom_call.1} parent=1 // pred_region
      %s13 = ssub.s32 512, 512
      %14 = vsyncadd [#allocation4], %s13
      %s15 = sshll.u32 [#allocation3], 4
      %s16 = int_to_ptr.vmem [resolvable:$true] %s15
      %21 = dma.hbm_to_vmem [thread:$0]  %s0, 512, %s16, [#allocation4], 64, 64, 4
    $region5: #{tpu_custom_call.1} parent=1 // pred_fallthru
      _
    // Predicated region
    $region6: #{tpu_custom_call.1} parent=1 // pred_check
      _
    $region7: #{tpu_custom_call.1} parent=1 // pred_check_branch
      %23 = sbr.rel (0) target = $region9
    $region8: #{tpu_custom_call.1} parent=1 // pred_region
      %s25 = ssub.s32 1024, 1024
      %26 = vsyncadd [#allocation7], %s25
      %s27 = sshll.u32 [#allocation6], 4
      %s28 = int_to_ptr.vmem [resolvable:$true] %s27
      %33 = dma.hbm_to_vmem [thread:$0]  %s1, 1024, %s28, [#allocation7], 64, 64, 4
    $region9: #{tpu_custom_call.1} parent=1 // pred_fallthru
      _
    // Predicated region
    $region10: #{tpu_custom_call.1} parent=1 // pred_check
      _
    $region11: #{tpu_custom_call.1} parent=1 // pred_check_branch
      %35 = sbr.rel (0) target = $region13
    $region12: #{tpu_custom_call.1} parent=1 // pred_region
      %36 = dma.done [#allocation4], 512
    $region13: #{tpu_custom_call.1} parent=1 // pred_fallthru
      _
    // Predicated region
    $region14: #{tpu_custom_call.1} parent=1 // pred_check
      _
    $region15: #{tpu_custom_call.1} parent=1 // pred_check_branch
      %38 = sbr.rel (0) target = $region17
    $region16: #{tpu_custom_call.1} parent=1 // pred_region
      %39 = dma.done [#allocation7], 1024
    $region17: #{tpu_custom_call.1} parent=1 // pred_fallthru
      _
    %p41 = scmp.eq.s32.totalorder 0, 0
    // Predicated region
    $region18: #{tpu_custom_call.1} parent=1 // pred_check
      %p42 = pneg %p41
    $region19: #{tpu_custom_call.1} parent=1 // pred_check_branch
      %44 = sbr.rel (%p42) target = $region21
    $region20: #{tpu_custom_call.1} parent=1 // pred_region
      %45 = vst [vmem:[#allocation2] sm:$0xff] 0.0
      %46 = vst [vmem:[#allocation2 + $0x8] sm:$0xff] 0.0
      %47 = vst [vmem:[#allocation2 + $0x10] sm:$0xff] 0.0
      %48 = vst [vmem:[#allocation2 + $0x18] sm:$0xff] 0.0
      %49 = vst [vmem:[#allocation2 + $0x20] sm:$0xff] 0.0
      %50 = vst [vmem:[#allocation2 + $0x28] sm:$0xff] 0.0
      %51 = vst [vmem:[#allocation2 + $0x30] sm:$0xff] 0.0
      %52 = vst [vmem:[#allocation2 + $0x38] sm:$0xff] 0.0
    $region21: #{tpu_custom_call.1} parent=1 // pred_fallthru
      _
    %v53 = vld [vmem:[#allocation2] sm:$0xff]
    %v54 = vld [vmem:[#allocation2 + $0x8] sm:$0xff]
    %v55 = vld [vmem:[#allocation2 + $0x10] sm:$0xff]
    %v56 = vld [vmem:[#allocation2 + $0x18] sm:$0xff]
    %v57 = vld [vmem:[#allocation2 + $0x20] sm:$0xff]
    %v58 = vld [vmem:[#allocation2 + $0x28] sm:$0xff]
    %v59 = vld [vmem:[#allocation2 + $0x30] sm:$0xff]
    %v60 = vld [vmem:[#allocation2 + $0x38] sm:$0xff]
    %v61 = vld [vmem:[#allocation3] sm:$0xf]
    %v62 = vld [vmem:[#allocation3 + $0x4] sm:$0xf]
    %v63 = vld [vmem:[#allocation3 + $0x8] sm:$0xf]
    %v64 = vld [vmem:[#allocation3 + $0xc] sm:$0xf]
    %v65 = vld [vmem:[#allocation3 + $0x10] sm:$0xf]
    %v66 = vld [vmem:[#allocation3 + $0x14] sm:$0xf]
    %v67 = vld [vmem:[#allocation3 + $0x18] sm:$0xf]
    %v68 = vld [vmem:[#allocation3 + $0x1c] sm:$0xf]
    %v69 = vld [vmem:[#allocation6] sm:$0xf]
    %v70 = vld [vmem:[#allocation6 + $0x4] sm:$0xf]
    %v71 = vld [vmem:[#allocation6 + $0x8] sm:$0xf]
    %v72 = vld [vmem:[#allocation6 + $0xc] sm:$0xf]
    %v73 = vld [vmem:[#allocation6 + $0x10] sm:$0xf]
    %v74 = vld [vmem:[#allocation6 + $0x14] sm:$0xf]
    %v75 = vld [vmem:[#allocation6 + $0x18] sm:$0xf]
    %v76 = vld [vmem:[#allocation6 + $0x1c] sm:$0xf]
    %v77 = vld [vmem:[#allocation6 + $0x20] sm:$0xf]
    %v78 = vld [vmem:[#allocation6 + $0x24] sm:$0xf]
    %v79 = vld [vmem:[#allocation6 + $0x28] sm:$0xf]
    %v80 = vld [vmem:[#allocation6 + $0x2c] sm:$0xf]
    %v81 = vld [vmem:[#allocation6 + $0x30] sm:$0xf]
    %v82 = vld [vmem:[#allocation6 + $0x34] sm:$0xf]
    %v83 = vld [vmem:[#allocation6 + $0x38] sm:$0xf]
    %v84 = vld [vmem:[#allocation6 + $0x3c] sm:$0xf]
    %v93 = vunpack.c.l.b16 %v61
    %v94 = vunpack.c.l.b16 %v62
    %v95 = vunpack.c.l.b16 %v63
    %v96 = vunpack.c.l.b16 %v64
    %v97 = vunpack.c.l.b16 %v65
    %v98 = vunpack.c.l.b16 %v66
    %v99 = vunpack.c.l.b16 %v67
    %v100 = vunpack.c.l.b16 %v68
    %v101 = vpack.c.b16 %v94, %v93
    %v102 = vpack.c.b16 %v96, %v95
    %v103 = vpack.c.b16 %v98, %v97
    %v104 = vpack.c.b16 %v100, %v99
    %v125 = vunpack.c.l.b16 %v69
    %v126 = vunpack.c.l.b16 %v70
    %v127 = vunpack.c.l.b16 %v71
    %v128 = vunpack.c.l.b16 %v72
    %v129 = vunpack.c.l.b16 %v73
    %v130 = vunpack.c.l.b16 %v74
    %v131 = vunpack.c.l.b16 %v75
    %v132 = vunpack.c.l.b16 %v76
    %v133 = vunpack.c.l.b16 %v77
    %v134 = vunpack.c.l.b16 %v78
    %v135 = vunpack.c.l.b16 %v79
    %v136 = vunpack.c.l.b16 %v80
    %v137 = vunpack.c.l.b16 %v81
    %v138 = vunpack.c.l.b16 %v82
    %v139 = vunpack.c.l.b16 %v83
    %v140 = vunpack.c.l.b16 %v84
    %v141 = vpack.c.b16 %v126, %v125
    %v142 = vpack.c.b16 %v128, %v127
    %v143 = vpack.c.b16 %v130, %v129
    %v144 = vpack.c.b16 %v132, %v131
    %v145 = vpack.c.b16 %v134, %v133
    %v146 = vpack.c.b16 %v136, %v135
    %v147 = vpack.c.b16 %v138, %v137
    %v148 = vpack.c.b16 %v140, %v139
    %157 = vmatprep.subr.bf16.mxu0 0
    %158 = vmatpush1.bf16.xpose.msra.mxu0 %v141
    %159 = vmatprep.subr.bf16.mxu0 0
    %160 = vmatpush1.bf16.xpose.msra.mxu0 %v142
    %161 = vmatprep.subr.bf16.mxu0 0
    %162 = vmatpush1.bf16.xpose.msra.mxu0 %v143
    %163 = vmatprep.subr.bf16.mxu0 0
    %164 = vmatpush1.bf16.xpose.msra.mxu0 %v144
    %165 = vmatprep.subr.bf16.mxu0 0
    %166 = vmatpush1.bf16.xpose.msra.mxu0 %v145
    %167 = vmatprep.subr.bf16.mxu0 0
    %168 = vmatpush1.bf16.xpose.msra.mxu0 %v146
    %169 = vmatprep.subr.bf16.mxu0 0
    %170 = vmatpush1.bf16.xpose.msra.mxu0 %v147
    %171 = vmatprep.subr.bf16.mxu0 0
    %172 = vmatpush1.bf16.xpose.msra.mxu0 %v148
    %173 = vmatprep.subr.bf16.mxu0 0
    %174 = vmatpush1.bf16.xpose.msra.mxu0 0
    %175 = vmatprep.subr.bf16.mxu0 0
    %176 = vmatpush1.bf16.xpose.msra.mxu0 0
    %177 = vmatprep.subr.bf16.mxu0 0
    %178 = vmatpush1.bf16.xpose.msra.mxu0 0
    %179 = vmatprep.subr.bf16.mxu0 0
    %180 = vmatpush1.bf16.xpose.msra.mxu0 0
    %181 = vmatprep.subr.bf16.mxu0 0
    %182 = vmatpush1.bf16.xpose.msra.mxu0 0
    %183 = vmatprep.subr.bf16.mxu0 0
    %184 = vmatpush1.bf16.xpose.msra.mxu0 0
    %185 = vmatprep.subr.bf16.mxu0 0
    %186 = vmatpush1.bf16.xpose.msra.mxu0 0
    %187 = vmatprep.subr.bf16.mxu0 0
    %188 = vmatpush1.bf16.xpose.msra.mxu0 0
    %189 = vmatprep.mubr.bf16.mxu0 0
    %190 = vmatmul.mubr.bf16.gmra.mrb[0].mxu0 %v101
    %v191 = vpop.f32.mrb[0].mxu0
    %v192 = vadd.f32 0.0, %v191
    %v193 = vpop.f32.mrb[0].mxu0
    %v194 = vpop.f32.mrb[0].mxu0
    %v195 = vadd.f32 0.0, %v194
    %v196 = vpop.f32.mrb[0].mxu0
    %197 = vmatprep.mubr.bf16.mxu0 0
    %198 = vmatmul.mubr.bf16.gmra.mrb[0].mxu0 %v102
    %v199 = vpop.f32.mrb[0].mxu0
    %v200 = vadd.f32 0.0, %v199
    %v201 = vpop.f32.mrb[0].mxu0
    %v202 = vpop.f32.mrb[0].mxu0
    %v203 = vadd.f32 0.0, %v202
    %v204 = vpop.f32.mrb[0].mxu0
    %205 = vmatprep.mubr.bf16.mxu0 0
    %206 = vmatmul.mubr.bf16.gmra.mrb[0].mxu0 %v103
    %v207 = vpop.f32.mrb[0].mxu0
    %v208 = vadd.f32 0.0, %v207
    %v209 = vpop.f32.mrb[0].mxu0
    %v210 = vpop.f32.mrb[0].mxu0
    %v211 = vadd.f32 0.0, %v210
    %v212 = vpop.f32.mrb[0].mxu0
    %213 = vmatprep.mubr.bf16.mxu0 0
    %214 = vmatmul.mubr.bf16.gmra.mrb[0].mxu0 %v104
    %v215 = vpop.f32.mrb[0].mxu0
    %v216 = vadd.f32 0.0, %v215
    %v217 = vpop.f32.mrb[0].mxu0
    %v218 = vpop.f32.mrb[0].mxu0
    %v219 = vadd.f32 0.0, %v218
    %v220 = vpop.f32.mrb[0].mxu0
    %221 = vdwg.mxu0
    %v222 = vadd.f32 %v53, %v192
    %v223 = vadd.f32 %v54, %v195
    %v224 = vadd.f32 %v55, %v200
    %v225 = vadd.f32 %v56, %v203
    %v226 = vadd.f32 %v57, %v208
    %v227 = vadd.f32 %v58, %v211
    %v228 = vadd.f32 %v59, %v216
    %v229 = vadd.f32 %v60, %v219
    %230 = vst [vmem:[#allocation2] sm:$0xff] %v222
    %231 = vst [vmem:[#allocation2 + $0x8] sm:$0xff] %v223
    %232 = vst [vmem:[#allocation2 + $0x10] sm:$0xff] %v224
    %233 = vst [vmem:[#allocation2 + $0x18] sm:$0xff] %v225
    %234 = vst [vmem:[#allocation2 + $0x20] sm:$0xff] %v226
    %235 = vst [vmem:[#allocation2 + $0x28] sm:$0xff] %v227
    %236 = vst [vmem:[#allocation2 + $0x30] sm:$0xff] %v228
    %237 = vst [vmem:[#allocation2 + $0x38] sm:$0xff] %v229
    // Predicated region
    $region22: #{tpu_custom_call.1} parent=1 // pred_check
      %p238 = pneg %p41
    $region23: #{tpu_custom_call.1} parent=1 // pred_check_branch
      %240 = sbr.rel (%p238) target = $region25
    $region24: #{tpu_custom_call.1} parent=1 // pred_region
      %v241 = vld [vmem:[#allocation2] sm:$0xff]
      %v242 = vld [vmem:[#allocation2 + $0x8] sm:$0xff]
      %v243 = vld [vmem:[#allocation2 + $0x10] sm:$0xff]
      %v244 = vld [vmem:[#allocation2 + $0x18] sm:$0xff]
      %v245 = vld [vmem:[#allocation2 + $0x20] sm:$0xff]
      %v246 = vld [vmem:[#allocation2 + $0x28] sm:$0xff]
      %v247 = vld [vmem:[#allocation2 + $0x30] sm:$0xff]
      %v248 = vld [vmem:[#allocation2 + $0x38] sm:$0xff]
      %v249 = vpack.c.bf16 %v242, %v241
      %v250 = vpack.c.bf16 %v244, %v243
      %v251 = vpack.c.bf16 %v246, %v245
      %v252 = vpack.c.bf16 %v248, %v247
      %v257 = vunpack.c.l.b16 %v249
      %v258 = vunpack.c.h.b16 %v249
      %v259 = vunpack.c.l.b16 %v250
      %v260 = vunpack.c.h.b16 %v250
      %v261 = vunpack.c.l.b16 %v251
      %v262 = vunpack.c.h.b16 %v251
      %v263 = vunpack.c.l.b16 %v252
      %v264 = vunpack.c.h.b16 %v252
      %v265 = vpack.c.b16 %v257, %v257
      %v266 = vpack.c.b16 %v258, %v258
      %v267 = vpack.c.b16 %v259, %v259
      %v268 = vpack.c.b16 %v260, %v260
      %v269 = vpack.c.b16 %v261, %v261
      %v270 = vpack.c.b16 %v262, %v262
      %v271 = vpack.c.b16 %v263, %v263
      %v272 = vpack.c.b16 %v264, %v264
      %281 = vst [vmem:[#allocation8] sm:$0xf] %v265
      %282 = vst [vmem:[#allocation8 + $0x4] sm:$0xf] %v266
      %283 = vst [vmem:[#allocation8 + $0x8] sm:$0xf] %v267
      %284 = vst [vmem:[#allocation8 + $0xc] sm:$0xf] %v268
      %285 = vst [vmem:[#allocation8 + $0x10] sm:$0xf] %v269
      %286 = vst [vmem:[#allocation8 + $0x14] sm:$0xf] %v270
      %287 = vst [vmem:[#allocation8 + $0x18] sm:$0xf] %v271
      %288 = vst [vmem:[#allocation8 + $0x1c] sm:$0xf] %v272
    $region25: #{tpu_custom_call.1} parent=1 // pred_fallthru
      _
    // Predicated region
    $region26: #{tpu_custom_call.1} parent=1 // pred_check
      _
    $region27: #{tpu_custom_call.1} parent=1 // pred_check_branch
      %290 = sbr.rel (0) target = $region29
    $region28: #{tpu_custom_call.1} parent=1 // pred_region
      %s292 = ssub.s32 512, 512
      %293 = vsyncadd [#allocation5], %s292
      %s294 = sshll.u32 [#allocation8], 4
      %s295 = int_to_ptr.vmem [resolvable:$true] %s294
      %300 = dma.vmem_to_hbm [thread:$0]  %s295, 512, %s2, [#allocation5], 64, 64, 4
    $region29: #{tpu_custom_call.1} parent=1 // pred_fallthru
      _
    // Predicated region
    $region30: #{tpu_custom_call.1} parent=1 // pred_check
      _
    $region31: #{tpu_custom_call.1} parent=1 // pred_check_branch
      %302 = sbr.rel (0) target = $region33
    $region32: #{tpu_custom_call.1} parent=1 // pred_region
      %303 = dma.done [#allocation5], 512
    $region33: #{tpu_custom_call.1} parent=1 // pred_fallthru
      _
    %304 = vsyncpa [#allocation4], 1
    %305 = vsyncpa [#allocation7], 1
    %306 = vsyncpa [#allocation5], 1

</llo_original>
